<compile_context>
chip_gen: v5e
topology: v5e:2x2
jax: 0.10.0
libtpu: 0.0.40
codegen_flags: <defaults>
</compile_context>

<pallas_src>
import functools
import math

import jax
import jax.numpy as jnp
from jax.experimental import pallas as pl
from jax.experimental.pallas import tpu as pltpu


# -----------------------------------------------------------------------------
# Single-call kernel: exact module forward (one express / adj_A / adj_B).
# Everything fits in whole-array VMEM blocks -> gridless fused kernel.
# -----------------------------------------------------------------------------
def _single_body(express_ref, adj_a_ref, adj_b_ref,
                 w_a_ref, w_b_ref, bias_ref, out_ref):
    x = express_ref[...]                               # (num_A, num_B)
    out_a = w_a_ref[...] * adj_a_ref[...]              # (num_A, num_A)  VPU
    out_b = w_b_ref[...] * adj_b_ref[...]              # (num_B, num_B)  VPU
    bias = bias_ref[...]                               # (1, num_B)

    # ax = A@x ;  xb + axb == (x + ax) @ B
    ax = jnp.dot(out_a, x, preferred_element_type=jnp.float32)
    y = jnp.dot(x + ax, out_b, preferred_element_type=jnp.float32)
    out_ref[...] = jnp.maximum(ax + y + bias, 0.0)


def multiply_layer(express, adj_a, adj_b, weight_a, weight_b, bias):
    num_a, num_b = express.shape
    bias2d = bias.reshape(1, num_b)
    return pl.pallas_call(
        _single_body,
        out_shape=jax.ShapeDtypeStruct((num_a, num_b), jnp.float32),
    )(express, adj_a, adj_b, weight_a, weight_b, bias2d)


# -----------------------------------------------------------------------------
# Batched / throughput kernel.
#   x_ref    : (groups_per_step * num_A, 128)   streamed per grid step
#   a_ref    : (num_A, num_A)                   resident  (output_A)
#   b_ref    : (128, 128)                       resident  (block-diag output_B)
#   bias_ref : (1, 128)                         resident  (lane-tiled bias)
#   out_ref  : (groups_per_step * num_A, 128)   streamed per grid step
#   ax_ref   : VMEM scratch, same shape as x_ref
# -----------------------------------------------------------------------------
def _batched_body(x_ref, a_ref, b_ref, bias_ref, out_ref, ax_ref,
                  *, groups, num_a):
    a = a_ref[...]                                      # (num_A, num_A)

    # Per-group A @ x, written straight into VMEM scratch (bounded live ranges;
    # static pl.ds slices are free views; each dot is a small MXU op).
    for g in range(groups):
        rows = pl.ds(g * num_a, num_a)
        ax_ref[rows, :] = jnp.dot(a, x_ref[rows, :],
                                  preferred_element_type=jnp.float32)

    x = x_ref[...]                                      # (Bt*num_A, 128)
    ax = ax_ref[...]
    # xb + axb == (x + ax) @ B_blockdiag  -> ONE full-width MXU matmul.
    y = jnp.dot(x + ax, b_ref[...], preferred_element_type=jnp.float32)
    out_ref[...] = jnp.maximum(ax + y + bias_ref[...], 0.0)


def multiply_layer_batched(express_b, adj_a, adj_b, weight_a, weight_b, bias,
                           *, groups_per_step=4):
    """Apply the layer to a batch of express matrices with shared params/adjs."""
    batch, num_a, num_b = express_b.shape
    assert 128 % num_b == 0, "lane packing requires num_B to divide 128"
    pack = 128 // num_b                     # problems per 128-lane group
    lanes = pack * num_b                    # == 128

    # ---- batch-invariant precompute (once per call, not per grid step) ----
    out_a = weight_a * adj_a                                  # (num_A, num_A)
    out_b = weight_b * adj_b                                  # (num_B, num_B)
    b_bd = jnp.kron(jnp.eye(pack, dtype=jnp.float32), out_b)  # (128, 128) blockdiag
    bias_t = jnp.tile(bias.reshape(1, num_b), (1, pack))      # (1, 128)

    # ---- lane-pack `pack` problems per 128-lane group ----
    pad_b = (-batch) % pack
    xb = jnp.pad(express_b, ((0, pad_b), (0, 0), (0, 0)))
    n_groups = xb.shape[0] // pack
    # packed[g, i, p*num_b + j] = express[g*pack + p, i, j]
    xp = (xb.reshape(n_groups, pack, num_a, num_b)
            .transpose(0, 2, 1, 3)
            .reshape(n_groups, num_a, lanes))

    # ---- pad groups to a multiple of groups_per_step, sublane-stack ----
    pad_g = (-n_groups) % groups_per_step
    xp = jnp.pad(xp, ((0, pad_g), (0, 0), (0, 0)))
    n_groups_padded = xp.shape[0]
    n_steps = n_groups_padded // groups_per_step
    xp2d = xp.reshape(n_groups_padded * num_a, lanes)

    tile_rows = groups_per_step * num_a

    out_packed = pl.pallas_call(
        functools.partial(_batched_body, groups=groups_per_step, num_a=num_a),
        out_shape=jax.ShapeDtypeStruct((n_groups_padded * num_a, lanes),
                                       jnp.float32),
        grid=(n_steps,),
        in_specs=[
            pl.BlockSpec((tile_rows, lanes), lambda s: (s, 0)),   # express (stream)
            pl.BlockSpec((num_a, num_a), lambda s: (0, 0)),       # output_A (resident)
            pl.BlockSpec((lanes, lanes), lambda s: (0, 0)),       # blockdiag B (resident)
            pl.BlockSpec((1, lanes), lambda s: (0, 0)),           # bias (resident)
        ],
        out_specs=pl.BlockSpec((tile_rows, lanes), lambda s: (s, 0)),
        scratch_shapes=[pltpu.VMEM((tile_rows, lanes), jnp.float32)],
        compiler_params=pltpu.CompilerParams(
            dimension_semantics=("parallel",)),   # shard steps across TCs (v7x)
    )(xp2d, out_a, b_bd, bias_t)

    # ---- unpack: (Gpad*num_A, 128) -> (batch, num_A, num_B) ----
    out = (out_packed[: n_groups * num_a]
           .reshape(n_groups, num_a, pack, num_b)
           .transpose(0, 2, 1, 3)
           .reshape(n_groups * pack, num_a, num_b))
    return out[:batch]


# -----------------------------------------------------------------------------
# Helpers / reference
# -----------------------------------------------------------------------------
def kaiming_uniform(key, shape):
    # torch.nn.init.kaiming_uniform_ defaults: a=0, fan_in mode, leaky_relu gain
    fan_in = shape[1]
    bound = math.sqrt(6.0 / fan_in)
    return jax.random.uniform(key, shape, jnp.float32, -bound, bound)


def _reference(express, adj_a, adj_b, weight_a, weight_b, bias):
    # Plain-JAX replica of the original (unfused) PyTorch forward.
    oa = weight_a * adj_a
    ob = weight_b * adj_b
    ax = oa @ express
    xb = express @ ob
    axb = (oa @ express) @ ob
    return jnp.maximum(ax + xb + axb + bias, 0.0)


if __name__ == "__main__":
    num_A, num_B, batch = 16, 32, 37   # 37 exercises both pack- and group-padding

    key = jax.random.PRNGKey(0)
    k_wa, k_wb, k_bias, k_x, k_aa, k_ab = jax.random.split(key, 6)

    # Parameters (shapes from MultiplyLayer.__init__).  The module inits bias to
    # zeros; a small nonzero bias is used here so the lane-tiled bias path is
    # actually exercised by the check.
    weight_A = kaiming_uniform(k_wa, (num_A, num_A))
    weight_B = kaiming_uniform(k_wb, (num_B, num_B))
    bias = 0.1 * jax.random.normal(k_bias, (num_B,), jnp.float32)

    # Deterministic example inputs.
    express_b = jax.random.normal(k_x, (batch, num_A, num_B), jnp.float32)
    adj_A = jax.random.normal(k_aa, (num_A, num_A), jnp.float32)
    adj_B = jax.random.normal(k_ab, (num_B, num_B), jnp.float32)

    # --- single-call path (exact module forward) ---
    out_single = multiply_layer(express_b[0], adj_A, adj_B,
                                weight_A, weight_B, bias)
    out_single = jax.block_until_ready(out_single)
    ref_single = _reference(express_b[0], adj_A, adj_B, weight_A, weight_B, bias)
    assert out_single.shape == (num_A, num_B)
    assert jnp.allclose(out_single, ref_single, atol=2e-4, rtol=1e-4)

    # --- batched path (lane-packed, resident weights, streamed express) ---
    out_batched = multiply_layer_batched(express_b, adj_A, adj_B,
                                         weight_A, weight_B, bias,
                                         groups_per_step=4)
    out_batched = jax.block_until_ready(out_batched)
    ref_batched = jax.vmap(
        lambda x: _reference(x, adj_A, adj_B, weight_A, weight_B, bias))(express_b)
    assert out_batched.shape == (batch, num_A, num_B)
    assert jnp.allclose(out_batched, ref_batched, atol=2e-4, rtol=1e-4)

    print("KERNEL_OK")
</pallas_src>

<mosaic_0001>
module attributes {stable_mosaic.version = 11 : i64} {
  func.func @_single_body(%arg0: memref<16x32xf32, #tpu.memory_space<vmem>>, %arg1: memref<16x16xf32, #tpu.memory_space<vmem>>, %arg2: memref<32x32xf32, #tpu.memory_space<vmem>>, %arg3: memref<16x16xf32, #tpu.memory_space<vmem>>, %arg4: memref<32x32xf32, #tpu.memory_space<vmem>>, %arg5: memref<1x32xf32, #tpu.memory_space<vmem>>, %arg6: memref<16x32xf32, #tpu.memory_space<vmem>>) attributes {dimension_semantics = [], scalar_prefetch = 0 : i64, scratch_operands = 0 : i64, tpu.core_type = #tpu.core_type<tc>} {
    %c0 = arith.constant 0 : index
    %c0_0 = arith.constant 0 : index
    %0 = vector.load %arg0[%c0, %c0_0] : memref<16x32xf32, #tpu.memory_space<vmem>>, vector<16x32xf32>
    %c0_1 = arith.constant 0 : index
    %c0_2 = arith.constant 0 : index
    %1 = vector.load %arg3[%c0_1, %c0_2] : memref<16x16xf32, #tpu.memory_space<vmem>>, vector<16x16xf32>
    %c0_3 = arith.constant 0 : index
    %c0_4 = arith.constant 0 : index
    %2 = vector.load %arg1[%c0_3, %c0_4] : memref<16x16xf32, #tpu.memory_space<vmem>>, vector<16x16xf32>
    %3 = arith.mulf %1, %2 : vector<16x16xf32>
    %c0_5 = arith.constant 0 : index
    %c0_6 = arith.constant 0 : index
    %4 = vector.load %arg4[%c0_5, %c0_6] : memref<32x32xf32, #tpu.memory_space<vmem>>, vector<32x32xf32>
    %c0_7 = arith.constant 0 : index
    %c0_8 = arith.constant 0 : index
    %5 = vector.load %arg2[%c0_7, %c0_8] : memref<32x32xf32, #tpu.memory_space<vmem>>, vector<32x32xf32>
    %6 = arith.mulf %4, %5 : vector<32x32xf32>
    %c0_9 = arith.constant 0 : index
    %c0_10 = arith.constant 0 : index
    %7 = vector.load %arg5[%c0_9, %c0_10] : memref<1x32xf32, #tpu.memory_space<vmem>>, vector<1x32xf32>
    %cst = arith.constant dense<0.000000e+00> : vector<16x32xf32>
    %8 = tpu.matmul %3, %0, %cst {dimension_numbers = #tpu.dot_dimension_numbers<[1], [0], [0], [1], [0, 0, 1, 1], [], []>} : vector<16x16xf32>, vector<16x32xf32>, vector<16x32xf32> -> vector<16x32xf32>
    %9 = arith.addf %0, %8 : vector<16x32xf32>
    %cst_11 = arith.constant dense<0.000000e+00> : vector<16x32xf32>
    %10 = tpu.matmul %9, %6, %cst_11 {dimension_numbers = #tpu.dot_dimension_numbers<[1], [0], [0], [1], [0, 0, 1, 1], [], []>} : vector<16x32xf32>, vector<32x32xf32>, vector<16x32xf32> -> vector<16x32xf32>
    %11 = arith.addf %8, %10 : vector<16x32xf32>
    %12 = vector.broadcast %7 : vector<1x32xf32> to vector<16x32xf32>
    %13 = arith.addf %11, %12 : vector<16x32xf32>
    %cst_12 = arith.constant 0.000000e+00 : f32
    %14 = vector.broadcast %cst_12 : f32 to vector<16x32xf32>
    %15 = arith.maximumf %13, %14 : vector<16x32xf32>
    %c0_13 = arith.constant 0 : index
    %c0_14 = arith.constant 0 : index
    %16 = vector.load %arg6[%c0_13, %c0_14] : memref<16x32xf32, #tpu.memory_space<vmem>>, vector<16x32xf32>
    tpu.vector_store %arg6[%c0_13, %c0_14], %15 {strides = array<i32>} : memref<16x32xf32, #tpu.memory_space<vmem>>, vector<16x32xf32>,
    return
  }
}

</mosaic_0001>

<llo_original>
// kernel: tpu_custom_call.1
$region0: #{tpu_custom_call.1}
  #allocation0 [shape = 'u32[]', space=smem, size = 0x4, offset = 0x4, fixed_abs, tag = 'smem constant byte address 0x4 - core index']
  #allocation1 [shape = 'u32[72,128]{1,0:T(1,128)}', space=vmem, size = 0x9000, scoped, tag = 'internal scratch']
  %s0 = inlined_call_operand.hbm [shape: f32[16,32], index: 0, kind: input, shape index: {}]
  %s1 = inlined_call_operand.hbm [shape: f32[16,16], index: 1, kind: input, shape index: {}]
  %s2 = inlined_call_operand.hbm [shape: f32[32,32], index: 2, kind: input, shape index: {}]
  %s3 = inlined_call_operand.hbm [shape: f32[16,16], index: 3, kind: input, shape index: {}]
  %s4 = inlined_call_operand.hbm [shape: f32[32,32], index: 4, kind: input, shape index: {}]
  %s5 = inlined_call_operand.vmem [shape: f32[1,32], index: 5, kind: input, shape index: {}]
  %s6 = inlined_call_operand.hbm [shape: f32[16,32], index: 6, kind: output, shape index: {}]
  %s7 = sld [smem:[#allocation0]]
  $region54: #{tpu_custom_call.1} parent=0
    _
  %s9 = ssub.s32 1, %s7
  %s10 = scalar_select 0, %s9, %s7
  $region1: #{tpu_custom_call.1} parent=0
    #allocation2 [shape = 'u8[8192]{0}', space=vmem, size = 0x2000, scoped, tag = 'input window, operand 0, single buffered']
    #allocation3 [shape = 's32[1]{0}', space=sflag, size = 0x4, scoped, tag = 'scoped memory for tpu_custom_call.1']
    #allocation4 [shape = 's32[1]{0}', space=sflag, size = 0x4, scoped, tag = 'scoped memory for tpu_custom_call.1']
    #allocation5 [shape = 'u8[8192]{0}', space=vmem, size = 0x2000, scoped, tag = 'input window, operand 1, single buffered']
    #allocation6 [shape = 's32[1]{0}', space=sflag, size = 0x4, scoped, tag = 'scoped memory for tpu_custom_call.1']
    #allocation7 [shape = 'u8[16384]{0}', space=vmem, size = 0x4000, scoped, tag = 'input window, operand 2, single buffered']
    #allocation8 [shape = 'u8[8192]{0}', space=vmem, size = 0x2000, scoped, tag = 'input window, operand 3, single buffered']
    #allocation9 [shape = 's32[1]{0}', space=sflag, size = 0x4, scoped, tag = 'scoped memory for tpu_custom_call.1']
    #allocation10 [shape = 'u8[16384]{0}', space=vmem, size = 0x4000, scoped, tag = 'input window, operand 4, single buffered']
    #allocation11 [shape = 'u8[8192]{0}', space=vmem, size = 0x2000, scoped, tag = 'output window, operand 0, single buffered']
    %11 = vsyncpa [#allocation3], 0
    %12 = vsyncpa [#allocation6], 0
    %13 = vsyncpa [#allocation9], 0
    %14 = vsyncpa [#allocation4], 0
    // Predicated region
    $region2: #{tpu_custom_call.1} parent=1 // pred_check
      _
    $region3: #{tpu_custom_call.1} parent=1 // pred_check_branch
      %16 = sbr.rel (0) target = $region5
    $region4: #{tpu_custom_call.1} parent=1 // pred_region
      %18 = vsyncadd [#allocation3], 0
      %s19 = sshll.u32 %s0, 4
      %s20 = int_to_ptr.hbm [resolvable:$true] %s19
      %s21 = sshll.u32 [#allocation2], 4
      %s22 = int_to_ptr.vmem [resolvable:$true] %s21
      %27 = dma.hbm_to_vmem [thread:$0]  %s20, 256, %s22, [#allocation3], 128, 128, 8
    $region5: #{tpu_custom_call.1} parent=1 // pred_fallthru
      _
    // Predicated region
    $region6: #{tpu_custom_call.1} parent=1 // pred_check
      _
    $region7: #{tpu_custom_call.1} parent=1 // pred_check_branch
      %29 = sbr.rel (0) target = $region9
    $region8: #{tpu_custom_call.1} parent=1 // pred_region
      %31 = vsyncadd [#allocation6], 0
      %s32 = sshll.u32 %s1, 4
      %s33 = int_to_ptr.hbm [resolvable:$true] %s32
      %s34 = sshll.u32 [#allocation5], 4
      %s35 = int_to_ptr.vmem [resolvable:$true] %s34
      %40 = dma.hbm_to_vmem [thread:$0]  %s33, 256, %s35, [#allocation6], 128, 128, 8
    $region9: #{tpu_custom_call.1} parent=1 // pred_fallthru
      _
    // Predicated region
    $region10: #{tpu_custom_call.1} parent=1 // pred_check
      _
    $region11: #{tpu_custom_call.1} parent=1 // pred_check_branch
      %42 = sbr.rel (0) target = $region13
    $region12: #{tpu_custom_call.1} parent=1 // pred_region
      %44 = vsyncadd [#allocation6], 0
      %s45 = sshll.u32 %s2, 4
      %s46 = int_to_ptr.hbm [resolvable:$true] %s45
      %s47 = sshll.u32 [#allocation7], 4
      %s48 = int_to_ptr.vmem [resolvable:$true] %s47
      %53 = dma.hbm_to_vmem [thread:$0]  %s46, 512, %s48, [#allocation6], 128, 128, 8
    $region13: #{tpu_custom_call.1} parent=1 // pred_fallthru
      _
    // Predicated region
    $region14: #{tpu_custom_call.1} parent=1 // pred_check
      _
    $region15: #{tpu_custom_call.1} parent=1 // pred_check_branch
      %55 = sbr.rel (0) target = $region17
    $region16: #{tpu_custom_call.1} parent=1 // pred_region
      %57 = vsyncadd [#allocation9], 0
      %s58 = sshll.u32 %s3, 4
      %s59 = int_to_ptr.hbm [resolvable:$true] %s58
      %s60 = sshll.u32 [#allocation8], 4
      %s61 = int_to_ptr.vmem [resolvable:$true] %s60
      %66 = dma.hbm_to_vmem [thread:$0]  %s59, 256, %s61, [#allocation9], 128, 128, 8
    $region17: #{tpu_custom_call.1} parent=1 // pred_fallthru
      _
    // Predicated region
    $region18: #{tpu_custom_call.1} parent=1 // pred_check
      _
    $region19: #{tpu_custom_call.1} parent=1 // pred_check_branch
      %68 = sbr.rel (0) target = $region21
    $region20: #{tpu_custom_call.1} parent=1 // pred_region
      %70 = vsyncadd [#allocation9], 0
      %s71 = sshll.u32 %s4, 4
      %s72 = int_to_ptr.hbm [resolvable:$true] %s71
      %s73 = sshll.u32 [#allocation10], 4
      %s74 = int_to_ptr.vmem [resolvable:$true] %s73
      %79 = dma.hbm_to_vmem [thread:$0]  %s72, 512, %s74, [#allocation9], 128, 128, 8
    $region21: #{tpu_custom_call.1} parent=1 // pred_fallthru
      _
    // Predicated region
    $region22: #{tpu_custom_call.1} parent=1 // pred_check
      _
    $region23: #{tpu_custom_call.1} parent=1 // pred_check_branch
      %81 = sbr.rel (0) target = $region25
    $region24: #{tpu_custom_call.1} parent=1 // pred_region
      _
    $region25: #{tpu_custom_call.1} parent=1 // pred_fallthru
      _
    // Predicated region
    $region26: #{tpu_custom_call.1} parent=1 // pred_check
      _
    $region27: #{tpu_custom_call.1} parent=1 // pred_check_branch
      %83 = sbr.rel (0) target = $region29
    $region28: #{tpu_custom_call.1} parent=1 // pred_region
      %85 = dma.done [#allocation3], 256
    $region29: #{tpu_custom_call.1} parent=1 // pred_fallthru
      _
    // Predicated region
    $region30: #{tpu_custom_call.1} parent=1 // pred_check
      _
    $region31: #{tpu_custom_call.1} parent=1 // pred_check_branch
      %87 = sbr.rel (0) target = $region33
    $region32: #{tpu_custom_call.1} parent=1 // pred_region
      %89 = dma.done [#allocation6], 256
    $region33: #{tpu_custom_call.1} parent=1 // pred_fallthru
      _
    // Predicated region
    $region34: #{tpu_custom_call.1} parent=1 // pred_check
      _
    $region35: #{tpu_custom_call.1} parent=1 // pred_check_branch
      %91 = sbr.rel (0) target = $region37
    $region36: #{tpu_custom_call.1} parent=1 // pred_region
      %93 = dma.done [#allocation6], 512
    $region37: #{tpu_custom_call.1} parent=1 // pred_fallthru
      _
    // Predicated region
    $region38: #{tpu_custom_call.1} parent=1 // pred_check
      _
    $region39: #{tpu_custom_call.1} parent=1 // pred_check_branch
      %95 = sbr.rel (0) target = $region41
    $region40: #{tpu_custom_call.1} parent=1 // pred_region
      %97 = dma.done [#allocation9], 256
    $region41: #{tpu_custom_call.1} parent=1 // pred_fallthru
      _
    // Predicated region
    $region42: #{tpu_custom_call.1} parent=1 // pred_check
      _
    $region43: #{tpu_custom_call.1} parent=1 // pred_check_branch
      %99 = sbr.rel (0) target = $region45
    $region44: #{tpu_custom_call.1} parent=1 // pred_region
      %101 = dma.done [#allocation9], 512
    $region45: #{tpu_custom_call.1} parent=1 // pred_fallthru
      _
    %v102 = vld [vmem:[#allocation2] sm:$0xff]
    %v103 = vld [vmem:[#allocation2 + $0x8] sm:$0xff]
    %v104 = vld [vmem:[#allocation8] sm:$0xff]
    %v105 = vld [vmem:[#allocation8 + $0x8] sm:$0xff]
    %v106 = vld [vmem:[#allocation5] sm:$0xff]
    %v107 = vld [vmem:[#allocation5 + $0x8] sm:$0xff]
    %v108 = vmul.f32 %v104, %v106
    %v109 = vmul.f32 %v105, %v107
    %v110 = vld [vmem:[#allocation10] sm:$0xff]
    %v111 = vld [vmem:[#allocation10 + $0x8] sm:$0xff]
    %v112 = vld [vmem:[#allocation10 + $0x10] sm:$0xff]
    %v113 = vld [vmem:[#allocation10 + $0x18] sm:$0xff]
    %v114 = vld [vmem:[#allocation7] sm:$0xff]
    %v115 = vld [vmem:[#allocation7 + $0x8] sm:$0xff]
    %v116 = vld [vmem:[#allocation7 + $0x10] sm:$0xff]
    %v117 = vld [vmem:[#allocation7 + $0x18] sm:$0xff]
    %v118 = vmul.f32 %v110, %v114
    %v119 = vmul.f32 %v111, %v115
    %v120 = vmul.f32 %v112, %v116
    %v121 = vmul.f32 %v113, %v117
    %v122 = vld [vmem:[%s5] sm:$0x1]
    %vm123 = vcmask 130048
    %v125 = vsel %vm123, %v108, 0
    %v128 = vsel %vm123, %v109, 0
    %130 = vmatpush.msra.mxu0 0.0
    %131 = vmatpush.msra.mxu0 0.0
    %132 = vmatpush.msra.mxu0 0.0
    %133 = vmatpush.msra.mxu0 0.0
    %134 = vmatpush.msra.mxu0 0.0
    %135 = vmatpush.msra.mxu0 0.0
    %136 = vmatpush.msra.mxu0 0.0
    %137 = vmatpush.msra.mxu0 0.0
    %138 = vmatpush.msra.mxu0 0.0
    %139 = vmatpush.msra.mxu0 0.0
    %140 = vmatpush.msra.mxu0 0.0
    %141 = vmatpush.msra.mxu0 0.0
    %142 = vmatpush.msra.mxu0 0.0
    %143 = vmatpush.msra.mxu0 0.0
    %144 = vmatpush.msra.mxu0 %v103
    %145 = vmatpush.msra.mxu0 %v102
    %146 = vmatmul.f32.gmra.mxu0 %v125
    %v147 = vpop.f32.mrf.mxu0
    %v148 = vadd.f32 0.0, %v147
    %149 = vmatmul.f32.gmra.mxu0 %v128
    %v150 = vpop.f32.mrf.mxu0
    %v151 = vadd.f32 0.0, %v150
    %152 = vdwg.mxu0
    %v153 = vadd.f32 %v102, %v148
    %v154 = vadd.f32 %v103, %v151
    %vm155 = vcmask 261120
    %v157 = vsel %vm155, %v153, 0
    %v160 = vsel %vm155, %v154, 0
    %162 = vmatpush.msra.mxu0 0.0
    %163 = vmatpush.msra.mxu0 0.0
    %164 = vmatpush.msra.mxu0 0.0
    %165 = vmatpush.msra.mxu0 0.0
    %166 = vmatpush.msra.mxu0 0.0
    %167 = vmatpush.msra.mxu0 0.0
    %168 = vmatpush.msra.mxu0 0.0
    %169 = vmatpush.msra.mxu0 0.0
    %170 = vmatpush.msra.mxu0 0.0
    %171 = vmatpush.msra.mxu0 0.0
    %172 = vmatpush.msra.mxu0 0.0
    %173 = vmatpush.msra.mxu0 0.0
    %174 = vmatpush.msra.mxu0 %v121
    %175 = vmatpush.msra.mxu0 %v120
    %176 = vmatpush.msra.mxu0 %v119
    %177 = vmatpush.msra.mxu0 %v118
    %178 = vmatmul.f32.gmra.mxu0 %v157
    %v179 = vpop.f32.mrf.mxu0
    %v180 = vadd.f32 0.0, %v179
    %181 = vmatmul.f32.gmra.mxu0 %v160
    %v182 = vpop.f32.mrf.mxu0
    %v183 = vadd.f32 0.0, %v182
    %184 = vdwg.mxu0
    %v185 = vadd.f32 %v148, %v180
    %v186 = vadd.f32 %v151, %v183
    %v188 = vperm.slane %v122, 0
    %v190 = vadd.f32 %v185, %v188
    %v191 = vadd.f32 %v186, %v188
    %v192 = vmax.f32 %v190, 0.0
    %v193 = vmax.f32 %v191, 0.0
    %194 = vst.msk [vmem:[#allocation11] sm:$0xff] %vm155, %v192
    %195 = vst.msk [vmem:[#allocation11 + $0x8] sm:$0xff] %vm155, %v193
    // Predicated region
    $region46: #{tpu_custom_call.1} parent=1 // pred_check
      _
    $region47: #{tpu_custom_call.1} parent=1 // pred_check_branch
      %197 = sbr.rel (0) target = $region49
    $region48: #{tpu_custom_call.1} parent=1 // pred_region
      %199 = vsyncadd [#allocation4], 0
      %s200 = sshll.u32 [#allocation11], 4
      %s201 = int_to_ptr.vmem [resolvable:$true] %s200
      %s202 = sshll.u32 %s6, 4
      %s203 = int_to_ptr.hbm [resolvable:$true] %s202
      %208 = dma.vmem_to_hbm [thread:$0]  %s201, 256, %s203, [#allocation4], 128, 128, 8
    $region49: #{tpu_custom_call.1} parent=1 // pred_fallthru
      _
    // Predicated region
    $region50: #{tpu_custom_call.1} parent=1 // pred_check
      _
    $region51: #{tpu_custom_call.1} parent=1 // pred_check_branch
      %210 = sbr.rel (0) target = $region53
    $region52: #{tpu_custom_call.1} parent=1 // pred_region
      %212 = dma.done [#allocation4], 256
    $region53: #{tpu_custom_call.1} parent=1 // pred_fallthru
      _
    %213 = vsyncpa [#allocation3], 1
    %214 = vsyncpa [#allocation6], 1
    %215 = vsyncpa [#allocation9], 1
    %216 = vsyncpa [#allocation4], 1

</llo_original>
